<compile_context>
chip_gen: v5e
topology: v5e:2x2
jax: 0.10.0
libtpu: 0.0.40
codegen_flags: <defaults>
</compile_context>

<pallas_src>
from functools import partial

import jax
import jax.numpy as jnp
from jax import lax
from jax.experimental import pallas as pl
from jax.experimental.pallas import tpu as pltpu


# ---------------------------------------------------------------------------
# Pallas kernels
# ---------------------------------------------------------------------------
def _encoder_fused_kernel(lengths_ref, x_ref, w_ref, b_ref,
                          feat_ref, logp_ref, prob_ref):
    """One (batch, seq-tile) block:
         feat = mask(pos < len) * (x @ W + b)        (bf16 MXU, f32 acc)
         logp = log_softmax(feat, axis=-1)            (fused epilogue)
         prob = softmax(feat, axis=-1)
    """
    ts = x_ref.shape[1]                      # seq-tile rows (static)
    b = pl.program_id(0)                     # batch index
    st = pl.program_id(1)                    # seq-tile index

    # MXU: bf16 x bf16 -> f32 accumulate; bias add on VPU.
    y = jnp.dot(x_ref[0], w_ref[...], preferred_element_type=jnp.float32)
    y = y + b_ref[...]                       # (ts, F) + (1, F)

    # In-kernel padding mask from scalar-prefetched lengths (no lane-1 DMA stream).
    length = lengths_ref[b]
    pos = st * ts + lax.broadcasted_iota(jnp.int32, (ts, 1), 0)
    feat = jnp.where(pos < length, y, 0.0)
    feat_ref[0] = feat

    # Fused normalized-probs epilogue over the lane dim (full F lives in this block).
    m = jnp.max(feat, axis=-1, keepdims=True)
    s = feat - m
    e = jnp.exp(s)
    denom = jnp.sum(e, axis=-1, keepdims=True)
    logp_ref[0] = s - jnp.log(denom)
    prob_ref[0] = e * pl.reciprocal(denom, approx=True)


def _normalize_kernel(x_ref, o_ref, *, log_probs):
    """Standalone row-tiled log_softmax / softmax over the last (lane) dim."""
    x = x_ref[...].astype(jnp.float32)
    m = jnp.max(x, axis=-1, keepdims=True)
    s = x - m
    e = jnp.exp(s)
    denom = jnp.sum(e, axis=-1, keepdims=True)
    if log_probs:
        o_ref[...] = s - jnp.log(denom)
    else:
        o_ref[...] = e * pl.reciprocal(denom, approx=True)


# ---------------------------------------------------------------------------
# Wrappers (glue: embedding gather, reshapes, spec plumbing)
# ---------------------------------------------------------------------------
def encoder_forward(src_tokens, src_lengths, params, *, seq_tile=64):
    """FairseqEncoderModel.forward: (B, S) tokens -> (B, S, F) features (+fused probs)."""
    B, S = src_tokens.shape
    emb_table = params["embed"]                              # (V, D) f32
    W = params["proj_w"].astype(jnp.bfloat16)                # (D, F) bf16 -> MXU
    bias = params["proj_b"].astype(jnp.float32)              # (1, F) f32
    D = emb_table.shape[1]
    F = W.shape[1]

    TS = min(seq_tile, S)
    assert S % TS == 0, "seq len must be divisible by the seq tile"
    assert F % 128 == 0, "features must be lane-dense (multiple of 128)"

    # Embedding lookup (gather) — glue, stays in plain JAX. bf16 halves HBM traffic.
    x = jnp.take(emb_table, src_tokens.reshape(-1), axis=0)
    x = x.astype(jnp.bfloat16).reshape(B, S, D)

    lengths = jnp.asarray(src_lengths, jnp.int32)            # (B,) -> SMEM prefetch

    cost = pl.CostEstimate(
        flops=2 * B * S * D * F + 8 * B * S * F,
        transcendentals=B * S * F,
        bytes_accessed=B * S * D * 2 + D * F * 2 + F * 4 + 3 * B * S * F * 4,
    )

    feats, logp, probs = pl.pallas_call(
        _encoder_fused_kernel,
        out_shape=(jax.ShapeDtypeStruct((B, S, F), jnp.float32),) * 3,
        grid_spec=pltpu.PrefetchScalarGridSpec(
            num_scalar_prefetch=1,
            grid=(B, S // TS),
            in_specs=[
                pl.BlockSpec((1, TS, D), lambda b, st, lens: (b, st, 0)),
                pl.BlockSpec((D, F), lambda b, st, lens: (0, 0)),
                pl.BlockSpec((1, F), lambda b, st, lens: (0, 0)),
            ],
            out_specs=[
                pl.BlockSpec((1, TS, F), lambda b, st, lens: (b, st, 0)),
                pl.BlockSpec((1, TS, F), lambda b, st, lens: (b, st, 0)),
                pl.BlockSpec((1, TS, F), lambda b, st, lens: (b, st, 0)),
            ],
        ),
        compiler_params=pltpu.CompilerParams(
            dimension_semantics=("parallel", "parallel"),
            vmem_limit_bytes=32 * 1024 * 1024,   # sized for v7x (64 MiB VMEM / 32 MiB scoped)
        ),
        cost_estimate=cost,
    )(lengths, x, W, bias)

    pos = jnp.arange(S, dtype=jnp.int32)[None, :]
    padding_mask = pos >= lengths[:, None]                   # True = padded (fairseq convention)
    return {
        "encoder_out": feats,
        "encoder_padding_mask": padding_mask,
        # fused epilogue results — consumed by get_normalized_probs without an
        # HBM round trip.  NOTE: padded rows have all-zero features, so their
        # softmax is uniform over F (same semantics as the original kernel).
        "_log_probs": logp,
        "_probs": probs,
    }


def get_normalized_probs(net_output, log_probs, *, row_tile=64):
    """FairseqEncoderModel.get_normalized_probs over net_output['encoder_out']."""
    fused_key = "_log_probs" if log_probs else "_probs"
    if fused_key in net_output:
        return net_output[fused_key]                         # fused path: no extra HBM trip

    logits = net_output["encoder_out"].astype(jnp.float32)   # (B, S, F)
    B, S, F = logits.shape
    BS = B * S
    TM = min(row_tile, BS)
    assert BS % TM == 0 and F % 128 == 0
    flat = logits.reshape(BS, F)

    out = pl.pallas_call(
        partial(_normalize_kernel, log_probs=log_probs),
        out_shape=jax.ShapeDtypeStruct((BS, F), jnp.float32),
        grid_spec=pltpu.PrefetchScalarGridSpec(
            num_scalar_prefetch=0,
            grid=(BS // TM,),
            in_specs=[pl.BlockSpec((TM, F), lambda i: (i, 0))],
            out_specs=pl.BlockSpec((TM, F), lambda i: (i, 0)),
        ),
        compiler_params=pltpu.CompilerParams(
            dimension_semantics=("parallel",),
            vmem_limit_bytes=32 * 1024 * 1024,
        ),
        cost_estimate=pl.CostEstimate(
            flops=8 * BS * F, transcendentals=BS * F, bytes_accessed=2 * BS * F * 4),
    )(flat)
    return out.reshape(B, S, F)


# ---------------------------------------------------------------------------
# Deterministic parameter init + driver
# ---------------------------------------------------------------------------
def init_params(key, vocab=64, embed_dim=128, features=256):
    k0, k1, k2 = jax.random.split(key, 3)
    return {
        "embed": jax.random.normal(k0, (vocab, embed_dim), jnp.float32) * 0.1,
        "proj_w": (jax.random.normal(k1, (embed_dim, features), jnp.float32) * 0.1
                   ).astype(jnp.bfloat16),
        "proj_b": jax.random.normal(k2, (1, features), jnp.float32) * 0.01,
    }


if __name__ == "__main__":
    key = jax.random.PRNGKey(0)
    # Small but TPU-tile-friendly shapes: lane dims multiples of 128.
    B, S, V, D, F = 2, 128, 64, 128, 256

    kp, kt = jax.random.split(key)
    params = init_params(kp, vocab=V, embed_dim=D, features=F)

    src_tokens = jax.random.randint(kt, (B, S), 0, V, dtype=jnp.int32)
    src_lengths = jnp.array([S, S - 37], dtype=jnp.int32)

    # forward: encoder-only model (fused projection + normalized-probs epilogue)
    net_output = encoder_forward(src_tokens, src_lengths, params)
    feats = jax.block_until_ready(net_output["encoder_out"])
    assert feats.shape == (B, S, F)

    # get_normalized_probs — fused path
    log_probs = jax.block_until_ready(get_normalized_probs(net_output, log_probs=True))
    probs = jax.block_until_ready(get_normalized_probs(net_output, log_probs=False))
    assert log_probs.shape == (B, S, F) and probs.shape == (B, S, F)

    # get_normalized_probs — standalone-kernel fallback path (raw logits only)
    stripped = {"encoder_out": net_output["encoder_out"]}
    log_probs_sa = jax.block_until_ready(get_normalized_probs(stripped, log_probs=True))
    probs_sa = jax.block_until_ready(get_normalized_probs(stripped, log_probs=False))

    # Pure-JAX reference (same bf16 operand rounding as the kernel)
    x_bf = jnp.take(params["embed"], src_tokens.reshape(-1), axis=0).astype(jnp.bfloat16)
    ref = (x_bf.astype(jnp.float32) @ params["proj_w"].astype(jnp.float32)
           + params["proj_b"])
    pos = jnp.arange(S, dtype=jnp.int32)[None, :]
    valid = (pos < src_lengths[:, None]).astype(jnp.float32).reshape(B * S, 1)
    ref = (ref * valid).reshape(B, S, F)
    ref_lp = jax.nn.log_softmax(ref, axis=-1)

    assert jnp.allclose(feats, ref, atol=2e-3, rtol=2e-3)
    assert jnp.allclose(log_probs, ref_lp, atol=2e-3, rtol=2e-3)
    assert jnp.allclose(jnp.sum(probs, axis=-1), 1.0, atol=1e-2)
    assert jnp.allclose(probs, jnp.exp(log_probs), atol=2e-3)
    assert jnp.allclose(log_probs_sa, log_probs, atol=2e-3)
    assert jnp.allclose(probs_sa, probs, atol=2e-3)

    print("KERNEL_OK")
</pallas_src>

<mosaic_0001>
module attributes {stable_mosaic.version = 11 : i64} {
  func.func @_encoder_fused_kernel(%arg0: i32, %arg1: i32, %arg2: memref<2xi32, #tpu.memory_space<smem>>, %arg3: memref<1x64x128xbf16, #tpu.memory_space<vmem>>, %arg4: memref<128x256xbf16, #tpu.memory_space<vmem>>, %arg5: memref<1x256xf32, #tpu.memory_space<vmem>>, %arg6: memref<1x64x256xf32, #tpu.memory_space<vmem>>, %arg7: memref<1x64x256xf32, #tpu.memory_space<vmem>>, %arg8: memref<1x64x256xf32, #tpu.memory_space<vmem>>) attributes {dimension_semantics = [#tpu.dimension_semantics<parallel>, #tpu.dimension_semantics<parallel>], iteration_bounds = array<i64: 2, 2>, scalar_prefetch = 1 : i64, scratch_operands = 0 : i64, tpu.core_type = #tpu.core_type<tc>, window_params = [{transform_indices = @transform_0, window_bounds = array<i64: 1, 64, 128>}, {pipeline_mode = #tpu.pipeline_mode<synchronous>, transform_indices = @transform_1, window_bounds = array<i64: 128, 256>}, {pipeline_mode = #tpu.pipeline_mode<synchronous>, transform_indices = @transform_2, window_bounds = array<i64: 1, 256>}, {transform_indices = @transform_3, window_bounds = array<i64: 1, 64, 256>}, {transform_indices = @transform_4, window_bounds = array<i64: 1, 64, 256>}, {transform_indices = @transform_5, window_bounds = array<i64: 1, 64, 256>}]} {
    %c0 = arith.constant 0 : index
    %c0_0 = arith.constant 0 : index
    %c0_1 = arith.constant 0 : index
    %0 = vector.load %arg3[%c0, %c0_0, %c0_1] : memref<1x64x128xbf16, #tpu.memory_space<vmem>>, vector<1x64x128xbf16>
    %1 = vector.shape_cast %0 : vector<1x64x128xbf16> to vector<64x128xbf16>
    %c0_2 = arith.constant 0 : index
    %c0_3 = arith.constant 0 : index
    %2 = vector.load %arg4[%c0_2, %c0_3] : memref<128x256xbf16, #tpu.memory_space<vmem>>, vector<128x256xbf16>
    %cst = arith.constant dense<0.000000e+00> : vector<64x256xf32>
    %3 = tpu.matmul %1, %2, %cst {dimension_numbers = #tpu.dot_dimension_numbers<[1], [0], [0], [1], [0, 0, 1, 1], [], []>} : vector<64x128xbf16>, vector<128x256xbf16>, vector<64x256xf32> -> vector<64x256xf32>
    %c0_4 = arith.constant 0 : index
    %c0_5 = arith.constant 0 : index
    %4 = vector.load %arg5[%c0_4, %c0_5] : memref<1x256xf32, #tpu.memory_space<vmem>>, vector<1x256xf32>
    %5 = vector.broadcast %4 : vector<1x256xf32> to vector<64x256xf32>
    %6 = arith.addf %3, %5 : vector<64x256xf32>
    %7 = arith.index_cast %arg0 : i32 to index
    %8 = memref.load %arg2[%7] : memref<2xi32, #tpu.memory_space<smem>>
    %c64_i32 = arith.constant 64 : i32
    %9 = arith.muli %arg1, %c64_i32 : i32
    %10 = tpu.iota {dimensions = array<i32: 0>} : vector<64x1xi32>
    %11 = vector.broadcast %9 : i32 to vector<64x1xi32>
    %12 = arith.addi %11, %10 : vector<64x1xi32>
    %13 = vector.broadcast %8 : i32 to vector<64x1xi32>
    %14 = arith.cmpi slt, %12, %13 : vector<64x1xi32>
    %cst_6 = arith.constant 0.000000e+00 : f32
    %15 = vector.shape_cast %14 : vector<64x1xi1> to vector<64x1xi1>
    %16 = vector.broadcast %15 : vector<64x1xi1> to vector<64x256xi1>
    %17 = vector.broadcast %cst_6 : f32 to vector<64x256xf32>
    %18 = arith.select %16, %6, %17 : vector<64x256xi1>, vector<64x256xf32>
    %c0_7 = arith.constant 0 : index
    %c0_8 = arith.constant 0 : index
    %c0_9 = arith.constant 0 : index
    %19 = vector.load %arg6[%c0_7, %c0_8, %c0_9] : memref<1x64x256xf32, #tpu.memory_space<vmem>>, vector<1x64x256xf32>
    %20 = vector.shape_cast %19 : vector<1x64x256xf32> to vector<64x256xf32>
    %21 = vector.shape_cast %18 : vector<64x256xf32> to vector<1x64x256xf32>
    tpu.vector_store %arg6[%c0_7, %c0_8, %c0_9], %21 {strides = array<i32>} : memref<1x64x256xf32, #tpu.memory_space<vmem>>, vector<1x64x256xf32>,
    %cst_10 = arith.constant dense<0xFF800000> : vector<64xf32>
    %22 = vector.multi_reduction <maximumf>, %18, %cst_10 [1] : vector<64x256xf32> to vector<64xf32>
    %23 = vector.shape_cast %22 : vector<64xf32> to vector<64x1xf32>
    %24 = vector.broadcast %23 : vector<64x1xf32> to vector<64x256xf32>
    %25 = arith.subf %18, %24 : vector<64x256xf32>
    %26 = math.exp %25 : vector<64x256xf32>
    %cst_11 = arith.constant dense<0.000000e+00> : vector<64xf32>
    %27 = vector.multi_reduction <add>, %26, %cst_11 [1] : vector<64x256xf32> to vector<64xf32>
    %28 = vector.shape_cast %27 : vector<64xf32> to vector<64x1xf32>
    %29 = math.log %28 : vector<64x1xf32>
    %30 = vector.broadcast %29 : vector<64x1xf32> to vector<64x256xf32>
    %31 = arith.subf %25, %30 : vector<64x256xf32>
    %c0_12 = arith.constant 0 : index
    %c0_13 = arith.constant 0 : index
    %c0_14 = arith.constant 0 : index
    %32 = vector.load %arg7[%c0_12, %c0_13, %c0_14] : memref<1x64x256xf32, #tpu.memory_space<vmem>>, vector<1x64x256xf32>
    %33 = vector.shape_cast %32 : vector<1x64x256xf32> to vector<64x256xf32>
    %34 = vector.shape_cast %31 : vector<64x256xf32> to vector<1x64x256xf32>
    tpu.vector_store %arg7[%c0_12, %c0_13, %c0_14], %34 {strides = array<i32>} : memref<1x64x256xf32, #tpu.memory_space<vmem>>, vector<1x64x256xf32>,
    %35 = tpu.reciprocal %28 {approx = true} : vector<64x1xf32> -> vector<64x1xf32>
    %36 = vector.broadcast %35 : vector<64x1xf32> to vector<64x256xf32>
    %37 = arith.mulf %26, %36 : vector<64x256xf32>
    %c0_15 = arith.constant 0 : index
    %c0_16 = arith.constant 0 : index
    %c0_17 = arith.constant 0 : index
    %38 = vector.load %arg8[%c0_15, %c0_16, %c0_17] : memref<1x64x256xf32, #tpu.memory_space<vmem>>, vector<1x64x256xf32>
    %39 = vector.shape_cast %38 : vector<1x64x256xf32> to vector<64x256xf32>
    %40 = vector.shape_cast %37 : vector<64x256xf32> to vector<1x64x256xf32>
    tpu.vector_store %arg8[%c0_15, %c0_16, %c0_17], %40 {strides = array<i32>} : memref<1x64x256xf32, #tpu.memory_space<vmem>>, vector<1x64x256xf32>,
    return
  }
  func.func @transform_0(%arg0: i32, %arg1: i32, %arg2: memref<2xi32, #tpu.memory_space<smem>>) -> (i32, i32, i32) {
    %c0_i32 = arith.constant 0 : i32
    %c0_i32_0 = arith.constant 0 : i32
    return %arg0, %arg1, %c0_i32 : i32, i32, i32
  }
  func.func @transform_1(%arg0: i32, %arg1: i32, %arg2: memref<2xi32, #tpu.memory_space<smem>>) -> (i32, i32) {
    %c0_i32 = arith.constant 0 : i32
    %c0_i32_0 = arith.constant 0 : i32
    %c0_i32_1 = arith.constant 0 : i32
    return %c0_i32, %c0_i32_0 : i32, i32
  }
  func.func @transform_2(%arg0: i32, %arg1: i32, %arg2: memref<2xi32, #tpu.memory_space<smem>>) -> (i32, i32) {
    %c0_i32 = arith.constant 0 : i32
    %c0_i32_0 = arith.constant 0 : i32
    %c0_i32_1 = arith.constant 0 : i32
    return %c0_i32, %c0_i32_0 : i32, i32
  }
  func.func @transform_3(%arg0: i32, %arg1: i32, %arg2: memref<2xi32, #tpu.memory_space<smem>>) -> (i32, i32, i32) {
    %c0_i32 = arith.constant 0 : i32
    %c0_i32_0 = arith.constant 0 : i32
    return %arg0, %arg1, %c0_i32 : i32, i32, i32
  }
  func.func @transform_4(%arg0: i32, %arg1: i32, %arg2: memref<2xi32, #tpu.memory_space<smem>>) -> (i32, i32, i32) {
    %c0_i32 = arith.constant 0 : i32
    %c0_i32_0 = arith.constant 0 : i32
    return %arg0, %arg1, %c0_i32 : i32, i32, i32
  }
  func.func @transform_5(%arg0: i32, %arg1: i32, %arg2: memref<2xi32, #tpu.memory_space<smem>>) -> (i32, i32, i32) {
    %c0_i32 = arith.constant 0 : i32
    %c0_i32_0 = arith.constant 0 : i32
    return %arg0, %arg1, %c0_i32 : i32, i32, i32
  }
}

</mosaic_0001>

<llo_original>
// kernel: tpu_custom_call.1
$region0: #{tpu_custom_call.1}
  #allocation0 [shape = 'u32[]', space=smem, size = 0x4, offset = 0x4, fixed_abs, tag = 'smem constant byte address 0x4 - core index']
  #allocation1 [shape = 'u32[72,128]{1,0:T(1,128)}', space=vmem, size = 0x9000, scoped, tag = 'internal scratch']
  #allocation2 [shape = 's32[1]{0}', space=sflag, size = 0x4, scoped, tag = 'scoped memory for tpu_custom_call.1']
  #allocation3 [shape = 'u8[512]{0}', space=smem, size = 0x200, scoped, tag = 'prefetched SMEM operand 0']
  %s0 = inlined_call_operand.hbm [shape: s32[2], index: 0, kind: input, shape index: {}]
  %s1 = inlined_call_operand.hbm [shape: bf16[2,128,128], index: 1, kind: input, shape index: {}]
  %s2 = inlined_call_operand.hbm [shape: bf16[128,256], index: 2, kind: input, shape index: {}]
  %s3 = inlined_call_operand.vmem [shape: f32[1,256], index: 3, kind: input, shape index: {}]
  %s4 = inlined_call_operand.hbm [shape: f32[2,128,256], index: 4, kind: output, shape index: {0}]
  %s5 = inlined_call_operand.hbm [shape: f32[2,128,256], index: 5, kind: output, shape index: {1}]
  %s6 = inlined_call_operand.hbm [shape: f32[2,128,256], index: 6, kind: output, shape index: {2}]
  %7 = xla_tuple %s4, %s5, %s6
  %s8 = sld [smem:[#allocation0]]
  $region69: #{tpu_custom_call.1} parent=0
    _
  %s10 = ssub.s32 1, %s8
  %s11 = scalar_select 0, %s10, %s8
  %s13 = sshll.u32 %s0, 4
  %s14 = int_to_ptr.hbm [resolvable:$true] %s13
  %16 = dma.hbm_to_smem %s14, 16, [#allocation3], [#allocation2]
  %18 = dma.done [#allocation2], 16
  %19 = sfence
  $region1: #{tpu_custom_call.1} parent=0
    #allocation4 [shape = 'u8[32768]{0}', space=vmem, size = 0x8000, scoped, tag = 'input window, operand 1']
    #allocation5 [shape = 's32[2]{0}', space=sflag, size = 0x8, scoped, tag = 'scoped memory for tpu_custom_call.1']
    #allocation6 [shape = 's32[2]{0}', space=sflag, size = 0x8, scoped, tag = 'scoped memory for tpu_custom_call.1']
    #allocation7 [shape = 'u8[65536]{0}', space=vmem, size = 0x10000, scoped, tag = 'input window, operand 2, single buffered']
    #allocation8 [shape = 's32[1]{0}', space=sflag, size = 0x4, scoped, tag = 'scoped memory for tpu_custom_call.1']
    #allocation9 [shape = 'u8[131072]{0}', space=vmem, size = 0x20000, scoped, tag = 'output window, operand 0']
    #allocation10 [shape = 'u8[131072]{0}', space=vmem, size = 0x20000, scoped, tag = 'output window, operand 1']
    #allocation11 [shape = 's32[2]{0}', space=sflag, size = 0x8, scoped, tag = 'scoped memory for tpu_custom_call.1']
    #allocation12 [shape = 'u8[131072]{0}', space=vmem, size = 0x20000, scoped, tag = 'output window, operand 2']
    %20 = vsyncpa [#allocation5], 0
    %s21 = scalar_lea.sflag [#allocation5], 1
    %22 = vsyncpa %s21, 0
    %23 = vsyncpa [#allocation8], 0
    %24 = vsyncpa [#allocation6], 0
    %s25 = scalar_lea.sflag [#allocation6], 1
    %26 = vsyncpa %s25, 0
    %27 = vsyncpa [#allocation11], 0
    %s28 = scalar_lea.sflag [#allocation11], 1
    %29 = vsyncpa %s28, 0
    loop: start=0, step=1, limit=6
    $region2: #{tpu_custom_call.1} parent=1 // loop_pre_header
      _
    $region3: #{tpu_custom_call.1} parent=1 // loop_header
      %s31 = sphi 0, %s35
      %p32 = scmp.ge.s32.totalorder %s31, 6
      %s38 = sphi 0, %s50
      %s39 = sphi 0, %s46
      %s40 = sphi 0, %s38
      %s41 = sphi 0, %s39
      %s42 = sphi 0, %s40
      %s43 = sphi 0, %s41
      %s55 = sphi 0, %s57
      %s58 = sphi 0, %s55
      %s59 = sphi 0, %s58
      %s75 = sphi 0, %s59
      %s79 = sphi 0, %s79
      %s81 = sphi 0, %s79
      %s82 = sphi 0, %s81
      %s96 = sphi 0, %s82
      %s100 = sphi 0, %s100
      %s102 = sphi 0, %s100
      %s103 = sphi 0, %s102
      %s117 = sphi 0, %s103
      %s125 = sphi 0, %s127
      %s128 = sphi 0, %s125
      %s129 = sphi 0, %s128
      %s145 = sphi 0, %s129
      %s153 = sphi 0, %s155
      %s156 = sphi 0, %s153
      %s157 = sphi 0, %s156
      %s173 = sphi 0, %s157
      %s181 = sphi 0, %s183
      %s184 = sphi 0, %s181
      %s185 = sphi 0, %s184
      %s201 = sphi 0, %s185
    $region4: #{tpu_custom_call.1} parent=1 // loop_header_branch
      %34 = sbr.rel (%p32) target = $region8
    $region5: #{tpu_custom_call.1} parent=1 // loop_body
      %s36 = ssub.s32 %s31, 1
      %s37 = ssub.s32 %s31, 2
      %s44 = sadd.s32 1, %s39
      %p45 = scmp.ge.s32.totalorder %s44, 2
      %s46 = scalar_select %p45, 0, %s44
      %s47 = sadd.s32 1, %s38
      %s48 = scalar_select %p45, %s47, %s38
      %p49 = scmp.ge.s32.totalorder %s48, 2
      %s50 = scalar_select %p49, 0, %s48
      %s51 = ssub.s32 %s38, %s50
      %s52 = ssub.s32 %s39, %s46
      %s53 = sor.u32 %s51, %s52
      %p54 = scmp.eq.s32.totalorder %s53, 0
      %s56 = sadd.s32 %s55, 1
      %s57 = scalar_select %p54, %s55, %s56
      %p60 = pneg %p54
      %p61 = scmp.eq.s32.totalorder %s31, 3
      %p62 = por %p60, %p61
      %p63 = scmp.ne.s32.totalorder %s55, %s58
      %p64 = scmp.eq.s32.totalorder %s31, 0
      %p65 = por %p63, %p64
      %p66 = scmp.ne.s32.totalorder %s55, %s58
      %p67 = scmp.eq.s32.totalorder %s36, 3
      %p68 = por %p66, %p67
      %p69 = scmp.ne.s32.totalorder %s58, %s59
      %p70 = scmp.eq.s32.totalorder %s36, 0
      %p71 = por %p69, %p70
      %p72 = scmp.ne.s32.totalorder %s58, %s59
      %p73 = scmp.eq.s32.totalorder %s37, 3
      %p74 = por %p72, %p73
      %p76 = scmp.ne.s32.totalorder %s59, %s75
      %p77 = scmp.eq.s32.totalorder %s37, 0
      %p78 = por %p76, %p77
      %s80 = sadd.s32 %s79, 1
      %p83 = scmp.eq.s32.totalorder %s31, 3
      %p84 = scmp.ne.s32.totalorder %s79, %s81
      %p85 = scmp.eq.s32.totalorder %s31, 0
      %p86 = por %p84, %p85
      %p87 = scmp.ne.s32.totalorder %s79, %s81
      %p88 = scmp.eq.s32.totalorder %s36, 3
      %p89 = por %p87, %p88
      %p90 = scmp.ne.s32.totalorder %s81, %s82
      %p91 = scmp.eq.s32.totalorder %s36, 0
      %p92 = por %p90, %p91
      %p93 = scmp.ne.s32.totalorder %s81, %s82
      %p94 = scmp.eq.s32.totalorder %s37, 3
      %p95 = por %p93, %p94
      %p97 = scmp.ne.s32.totalorder %s82, %s96
      %p98 = scmp.eq.s32.totalorder %s37, 0
      %p99 = por %p97, %p98
      %s101 = sadd.s32 %s100, 1
      %p104 = scmp.eq.s32.totalorder %s31, 3
      %p105 = scmp.ne.s32.totalorder %s100, %s102
      %p106 = scmp.eq.s32.totalorder %s31, 0
      %p107 = por %p105, %p106
      %p108 = scmp.ne.s32.totalorder %s100, %s102
      %p109 = scmp.eq.s32.totalorder %s36, 3
      %p110 = por %p108, %p109
      %p111 = scmp.ne.s32.totalorder %s102, %s103
      %p112 = scmp.eq.s32.totalorder %s36, 0
      %p113 = por %p111, %p112
      %p114 = scmp.ne.s32.totalorder %s102, %s103
      %p115 = scmp.eq.s32.totalorder %s37, 3
      %p116 = por %p114, %p115
      %p118 = scmp.ne.s32.totalorder %s103, %s117
      %p119 = scmp.eq.s32.totalorder %s37, 0
      %p120 = por %p118, %p119
      %s121 = ssub.s32 %s38, %s50
      %s122 = ssub.s32 %s39, %s46
      %s123 = sor.u32 %s121, %s122
      %p124 = scmp.eq.s32.totalorder %s123, 0
      %s126 = sadd.s32 %s125, 1
      %s127 = scalar_select %p124, %s125, %s126
      %p130 = pneg %p124
      %p131 = scmp.eq.s32.totalorder %s31, 3
      %p132 = por %p130, %p131
      %p133 = scmp.ne.s32.totalorder %s125, %s128
      %p134 = scmp.eq.s32.totalorder %s31, 0
      %p135 = por %p133, %p134
      %p136 = scmp.ne.s32.totalorder %s125, %s128
      %p137 = scmp.eq.s32.totalorder %s36, 3
      %p138 = por %p136, %p137
      %p139 = scmp.ne.s32.totalorder %s128, %s129
      %p140 = scmp.eq.s32.totalorder %s36, 0
      %p141 = por %p139, %p140
      %p142 = scmp.ne.s32.totalorder %s128, %s129
      %p143 = scmp.eq.s32.totalorder %s37, 3
      %p144 = por %p142, %p143
      %p146 = scmp.ne.s32.totalorder %s129, %s145
      %p147 = scmp.eq.s32.totalorder %s37, 0
      %p148 = por %p146, %p147
      %s149 = ssub.s32 %s38, %s50
      %s150 = ssub.s32 %s39, %s46
      %s151 = sor.u32 %s149, %s150
      %p152 = scmp.eq.s32.totalorder %s151, 0
      %s154 = sadd.s32 %s153, 1
      %s155 = scalar_select %p152, %s153, %s154
      %p158 = pneg %p152
      %p159 = scmp.eq.s32.totalorder %s31, 3
      %p160 = por %p158, %p159
      %p161 = scmp.ne.s32.totalorder %s153, %s156
      %p162 = scmp.eq.s32.totalorder %s31, 0
      %p163 = por %p161, %p162
      %p164 = scmp.ne.s32.totalorder %s153, %s156
      %p165 = scmp.eq.s32.totalorder %s36, 3
      %p166 = por %p164, %p165
      %p167 = scmp.ne.s32.totalorder %s156, %s157
      %p168 = scmp.eq.s32.totalorder %s36, 0
      %p169 = por %p167, %p168
      %p170 = scmp.ne.s32.totalorder %s156, %s157
      %p171 = scmp.eq.s32.totalorder %s37, 3
      %p172 = por %p170, %p171
      %p174 = scmp.ne.s32.totalorder %s157, %s173
      %p175 = scmp.eq.s32.totalorder %s37, 0
      %p176 = por %p174, %p175
      %s177 = ssub.s32 %s38, %s50
      %s178 = ssub.s32 %s39, %s46
      %s179 = sor.u32 %s177, %s178
      %p180 = scmp.eq.s32.totalorder %s179, 0
      %s182 = sadd.s32 %s181, 1
      %s183 = scalar_select %p180, %s181, %s182
      %p186 = pneg %p180
      %p187 = scmp.eq.s32.totalorder %s31, 3
      %p188 = por %p186, %p187
      %p189 = scmp.ne.s32.totalorder %s181, %s184
      %p190 = scmp.eq.s32.totalorder %s31, 0
      %p191 = por %p189, %p190
      %p192 = scmp.ne.s32.totalorder %s181, %s184
      %p193 = scmp.eq.s32.totalorder %s36, 3
      %p194 = por %p192, %p193
      %p195 = scmp.ne.s32.totalorder %s184, %s185
      %p196 = scmp.eq.s32.totalorder %s36, 0
      %p197 = por %p195, %p196
      %p198 = scmp.ne.s32.totalorder %s184, %s185
      %p199 = scmp.eq.s32.totalorder %s37, 3
      %p200 = por %p198, %p199
      %p202 = scmp.ne.s32.totalorder %s185, %s201
      %p203 = scmp.eq.s32.totalorder %s37, 0
      %p204 = por %p202, %p203
      %p205 = scmp.le.s32.totalorder 1, %s31
      %p206 = scmp.lt.s32.totalorder %s31, 5
      %p207 = pnand %p205, %p206
      %p208 = pneg %p207
      // Predicated region
      $region9: #{tpu_custom_call.1} parent=5 // pred_check
        _
      $region10: #{tpu_custom_call.1} parent=5 // pred_check_branch
        %210 = sbr.rel (%p207) target = $region12
      $region11: #{tpu_custom_call.1} parent=5 // pred_region
        %s211 = ssub.s32 %s31, 1
        // Predicated region
        $region13: #{tpu_custom_call.1} parent=11 // pred_check
          %p212 = pneg %p92
        $region14: #{tpu_custom_call.1} parent=11 // pred_check_branch
          %214 = sbr.rel (%p212) target = $region16
        $region15: #{tpu_custom_call.1} parent=11 // pred_region
          %216 = vsyncadd [#allocation8], 0
          %s217 = sshll.u32 %s2, 4
          %s218 = int_to_ptr.hbm [resolvable:$true] %s217
          %s219 = sshll.u32 [#allocation7], 4
          %s220 = int_to_ptr.vmem [resolvable:$true] %s219
          %225 = dma.hbm_to_vmem [thread:$0]  %s218, 2048, %s220, [#allocation8], 128, 128, 8
        $region16: #{tpu_custom_call.1} parent=11 // pred_fallthru
          _
        // Predicated region
        $region17: #{tpu_custom_call.1} parent=11 // pred_check
          %p226 = pneg %p113
        $region18: #{tpu_custom_call.1} parent=11 // pred_check_branch
          %228 = sbr.rel (%p226) target = $region20
        $region19: #{tpu_custom_call.1} parent=11 // pred_region
          _
        $region20: #{tpu_custom_call.1} parent=11 // pred_fallthru
          _
      $region12: #{tpu_custom_call.1} parent=5 // pred_fallthru
        _
      %p229 = scmp.lt.s32.totalorder %s31, 4
      // Predicated region
      $region21: #{tpu_custom_call.1} parent=5 // pred_check
        %p230 = pneg %p229
      $region22: #{tpu_custom_call.1} parent=5 // pred_check_branch
        %232 = sbr.rel (%p230) target = $region24
      $region23: #{tpu_custom_call.1} parent=5 // pred_region
        // Predicated region
        $region25: #{tpu_custom_call.1} parent=23 // pred_check
          %p233 = pneg %p65
        $region26: #{tpu_custom_call.1} parent=23 // pred_check_branch
          %235 = sbr.rel (%p233) target = $region28
        $region27: #{tpu_custom_call.1} parent=23 // pred_region
          %s236 = sand.u32 %s55, 1
          %s237 = scalar_lea.sflag [#allocation5], %s236
          %s238 = sand.u32 %s55, 1
          %s239 = smul.addr %s238, 32
          %s240 = scalar_lea.vmem [#allocation4], %s239
          %s241 = smul.u32 8, %s39
          %243 = vsyncadd %s237, 0
          %s244 = smul.addr %s38, 16
          %s245 = sadd.s32 %s241, %s244
          %s246 = smul.addr %s245, 4
          %s247 = scalar_lea.hbm %s1, %s246
          %s248 = sshll.u32 %s247, 4
          %s249 = int_to_ptr.hbm [resolvable:$true] %s248
          %s250 = sshll.u32 %s240, 4
          %s251 = int_to_ptr.vmem [resolvable:$true] %s250
          %256 = dma.hbm_to_vmem [thread:$0]  %s249, 512, %s251, %s237, 64, 64, 4
        $region28: #{tpu_custom_call.1} parent=23 // pred_fallthru
          _
      $region24: #{tpu_custom_call.1} parent=5 // pred_fallthru
        _
      %p257 = scmp.le.s32.totalorder 1, %s31
      %p258 = scmp.lt.s32.totalorder %s31, 5
      %p259 = pnand %p257, %p258
      %p260 = pneg %p259
      // Predicated region
      $region29: #{tpu_custom_call.1} parent=5 // pred_check
        _
      $region30: #{tpu_custom_call.1} parent=5 // pred_check_branch
        %262 = sbr.rel (%p259) target = $region32
      $region31: #{tpu_custom_call.1} parent=5 // pred_region
        %s263 = ssub.s32 %s31, 1
        %s264 = sand.u32 %s58, 1
        %s265 = scalar_lea.sflag [#allocation5], %s264
        %s266 = sand.u32 %s58, 1
        %s267 = smul.addr %s266, 32
        %s268 = scalar_lea.vmem [#allocation4], %s267
        // Predicated region
        $region33: #{tpu_custom_call.1} parent=31 // pred_check
          %p269 = pneg %p71
        $region34: #{tpu_custom_call.1} parent=31 // pred_check_branch
          %271 = sbr.rel (%p269) target = $region36
        $region35: #{tpu_custom_call.1} parent=31 // pred_region
          %273 = dma.done %s265, 512
        $region36: #{tpu_custom_call.1} parent=31 // pred_fallthru
          _
        // Predicated region
        $region37: #{tpu_custom_call.1} parent=31 // pred_check
          %p274 = pneg %p92
        $region38: #{tpu_custom_call.1} parent=31 // pred_check_branch
          %276 = sbr.rel (%p274) target = $region40
        $region39: #{tpu_custom_call.1} parent=31 // pred_region
          %278 = dma.done [#allocation8], 2048
        $region40: #{tpu_custom_call.1} parent=31 // pred_fallthru
          _
        %s279 = sand.u32 %s58, 1
        %s280 = scalar_lea.sflag [#allocation5], %s279
        %s281 = sand.u32 %s58, 1
        %s282 = smul.addr %s281, 32
        %s283 = scalar_lea.vmem [#allocation4], %s282
        %p284 = pneg %p71
        %p285 = pneg %p68
        %p286 = pneg %p92
        %p287 = pneg %p89
        %p288 = pneg %p113
        %p289 = pneg %p110
        %p290 = pneg %p141
        %p291 = pneg %p138
        %s292 = sand.u32 %s128, 1
        %s293 = scalar_lea.sflag [#allocation6], %s292
        %s294 = sand.u32 %s128, 1
        %s295 = smul.addr %s294, 128
        %s296 = scalar_lea.vmem [#allocation9], %s295
        %p297 = pneg %p169
        %p298 = pneg %p166
        %s299 = sand.u32 %s36, 1
        %s300 = scalar_lea.sflag [#allocation11], %s299
        %s301 = sand.u32 %s156, 1
        %s302 = smul.addr %s301, 128
        %s303 = scalar_lea.vmem [#allocation10], %s302
        %p304 = pneg %p197
        %p305 = pneg %p194
        %s306 = sand.u32 %s36, 1
        %s307 = scalar_lea.sflag [#allocation11], %s306
        %s308 = sand.u32 %s184, 1
        %s309 = smul.addr %s308, 128
        %s310 = scalar_lea.vmem [#allocation12], %s309
        %s311 = smul.u32 8, %s41
        %s312 = smul.u32 8, %s41
        %s313 = smul.u32 8, %s41
        %s314 = smul.u32 8, %s41
        %v315 = vld [vmem:[%s268] sm:$0xf]
        %v316 = vld [vmem:[%s268 + $0x4] sm:$0xf]
        %v317 = vld [vmem:[%s268 + $0x8] sm:$0xf]
        %v318 = vld [vmem:[%s268 + $0xc] sm:$0xf]
        %v319 = vld [vmem:[%s268 + $0x10] sm:$0xf]
        %v320 = vld [vmem:[%s268 + $0x14] sm:$0xf]
        %v321 = vld [vmem:[%s268 + $0x18] sm:$0xf]
        %v322 = vld [vmem:[%s268 + $0x1c] sm:$0xf]
        %v323 = vld [vmem:[#allocation7] sm:$0xff]
        %v324 = vld [vmem:[#allocation7 + $0x8] sm:$0xff]
        %v325 = vld [vmem:[#allocation7 + $0x10] sm:$0xff]
        %v326 = vld [vmem:[#allocation7 + $0x18] sm:$0xff]
        %v327 = vld [vmem:[#allocation7 + $0x20] sm:$0xff]
        %v328 = vld [vmem:[#allocation7 + $0x28] sm:$0xff]
        %v329 = vld [vmem:[#allocation7 + $0x30] sm:$0xff]
        %v330 = vld [vmem:[#allocation7 + $0x38] sm:$0xff]
        %v331 = vld [vmem:[#allocation7 + $0x40] sm:$0xff]
        %v332 = vld [vmem:[#allocation7 + $0x48] sm:$0xff]
        %v333 = vld [vmem:[#allocation7 + $0x50] sm:$0xff]
        %v334 = vld [vmem:[#allocation7 + $0x58] sm:$0xff]
        %v335 = vld [vmem:[#allocation7 + $0x60] sm:$0xff]
        %v336 = vld [vmem:[#allocation7 + $0x68] sm:$0xff]
        %v337 = vld [vmem:[#allocation7 + $0x70] sm:$0xff]
        %v338 = vld [vmem:[#allocation7 + $0x78] sm:$0xff]
        %v339 = vld [vmem:[%s3] sm:$0x3]
        %v341 = vperm.slane %v339, 0
        %v342 = vperm.slane %v339, 1
        %v353 = vunpack.c.l.b16 %v315
        %v354 = vunpack.c.l.b16 %v316
        %v355 = vunpack.c.l.b16 %v317
        %v356 = vunpack.c.l.b16 %v318
        %v357 = vunpack.c.l.b16 %v319
        %v358 = vunpack.c.l.b16 %v320
        %v359 = vunpack.c.l.b16 %v321
        %v360 = vunpack.c.l.b16 %v322
        %v361 = vpack.c.b16 %v354, %v353
        %v362 = vpack.c.b16 %v356, %v355
        %v363 = vpack.c.b16 %v358, %v357
        %v364 = vpack.c.b16 %v360, %v359
        %v385 = vunpack.c.l.b16 %v323
        %v386 = vunpack.c.h.b16 %v323
        %v387 = vunpack.c.l.b16 %v324
        %v388 = vunpack.c.h.b16 %v324
        %v389 = vunpack.c.l.b16 %v325
        %v390 = vunpack.c.h.b16 %v325
        %v391 = vunpack.c.l.b16 %v326
        %v392 = vunpack.c.h.b16 %v326
        %v393 = vunpack.c.l.b16 %v327
        %v394 = vunpack.c.h.b16 %v327
        %v395 = vunpack.c.l.b16 %v328
        %v396 = vunpack.c.h.b16 %v328
        %v397 = vunpack.c.l.b16 %v329
        %v398 = vunpack.c.h.b16 %v329
        %v399 = vunpack.c.l.b16 %v330
        %v400 = vunpack.c.h.b16 %v330
        %v401 = vunpack.c.l.b16 %v331
        %v402 = vunpack.c.h.b16 %v331
        %v403 = vunpack.c.l.b16 %v332
        %v404 = vunpack.c.h.b16 %v332
        %v405 = vunpack.c.l.b16 %v333
        %v406 = vunpack.c.h.b16 %v333
        %v407 = vunpack.c.l.b16 %v334
        %v408 = vunpack.c.h.b16 %v334
        %v409 = vunpack.c.l.b16 %v335
        %v410 = vunpack.c.h.b16 %v335
        %v411 = vunpack.c.l.b16 %v336
        %v412 = vunpack.c.h.b16 %v336
        %v413 = vunpack.c.l.b16 %v337
        %v414 = vunpack.c.h.b16 %v337
        %v415 = vunpack.c.l.b16 %v338
        %v416 = vunpack.c.h.b16 %v338
        %v417 = vpack.c.b16 %v387, %v385
        %v418 = vpack.c.b16 %v388, %v386
        %v419 = vpack.c.b16 %v391, %v389
        %v420 = vpack.c.b16 %v392, %v390
        %v421 = vpack.c.b16 %v395, %v393
        %v422 = vpack.c.b16 %v396, %v394
        %v423 = vpack.c.b16 %v399, %v397
        %v424 = vpack.c.b16 %v400, %v398
        %v425 = vpack.c.b16 %v403, %v401
        %v426 = vpack.c.b16 %v404, %v402
        %v427 = vpack.c.b16 %v407, %v405
        %v428 = vpack.c.b16 %v408, %v406
        %v429 = vpack.c.b16 %v411, %v409
        %v430 = vpack.c.b16 %v412, %v410
        %v431 = vpack.c.b16 %v415, %v413
        %v432 = vpack.c.b16 %v416, %v414
        %449 = vmatpush.bf16.msra.mxu0 %v431
        %450 = vmatpush.bf16.msra.mxu0 %v429
        %451 = vmatpush.bf16.msra.mxu0 %v427
        %452 = vmatpush.bf16.msra.mxu0 %v425
        %453 = vmatpush.bf16.msra.mxu0 %v423
        %454 = vmatpush.bf16.msra.mxu0 %v421
        %455 = vmatpush.bf16.msra.mxu0 %v419
        %456 = vmatpush.bf16.msra.mxu0 %v417
        %457 = vmatmul.bf16.gmra.mxu0 %v361
        %v458 = vpop.f32.mrf.mxu0
        %v459 = vadd.f32 %v341, %v458
        %v460 = vpop.f32.mrf.mxu0
        %v461 = vadd.f32 %v341, %v460
        %462 = vmatmul.bf16.gmra.mxu0 %v362
        %v463 = vpop.f32.mrf.mxu0
        %v464 = vadd.f32 %v341, %v463
        %v465 = vpop.f32.mrf.mxu0
        %v466 = vadd.f32 %v341, %v465
        %467 = vmatmul.bf16.gmra.mxu0 %v363
        %v468 = vpop.f32.mrf.mxu0
        %v469 = vadd.f32 %v341, %v468
        %v470 = vpop.f32.mrf.mxu0
        %v471 = vadd.f32 %v341, %v470
        %472 = vmatmul.bf16.gmra.mxu0 %v364
        %v473 = vpop.f32.mrf.mxu0
        %v474 = vadd.f32 %v341, %v473
        %v475 = vpop.f32.mrf.mxu0
        %v476 = vadd.f32 %v341, %v475
        %477 = vdwg.mxu0
        %478 = vmatpush.bf16.msra.mxu0 %v432
        %479 = vmatpush.bf16.msra.mxu0 %v430
        %480 = vmatpush.bf16.msra.mxu0 %v428
        %481 = vmatpush.bf16.msra.mxu0 %v426
        %482 = vmatpush.bf16.msra.mxu0 %v424
        %483 = vmatpush.bf16.msra.mxu0 %v422
        %484 = vmatpush.bf16.msra.mxu0 %v420
        %485 = vmatpush.bf16.msra.mxu0 %v418
        %486 = vmatmul.bf16.gmra.mxu0 %v361
        %v487 = vpop.f32.mrf.mxu0
        %v488 = vadd.f32 %v342, %v487
        %v489 = vpop.f32.mrf.mxu0
        %v490 = vadd.f32 %v342, %v489
        %491 = vmatmul.bf16.gmra.mxu0 %v362
        %v492 = vpop.f32.mrf.mxu0
        %v493 = vadd.f32 %v342, %v492
        %v494 = vpop.f32.mrf.mxu0
        %v495 = vadd.f32 %v342, %v494
        %496 = vmatmul.bf16.gmra.mxu0 %v363
        %v497 = vpop.f32.mrf.mxu0
        %v498 = vadd.f32 %v342, %v497
        %v499 = vpop.f32.mrf.mxu0
        %v500 = vadd.f32 %v342, %v499
        %501 = vmatmul.bf16.gmra.mxu0 %v364
        %v502 = vpop.f32.mrf.mxu0
        %v503 = vadd.f32 %v342, %v502
        %v504 = vpop.f32.mrf.mxu0
        %v505 = vadd.f32 %v342, %v504
        %506 = vdwg.mxu0
        %s507 = sld [smem:[#allocation3 + %s40]]
        %s508 = smul.u32 %s41, 64
        %v509 = vlaneseq
        %v510 = vshrl.u32 %v509, 7
        %v511 = vadd.s32 %v510, 8
        %v512 = vadd.s32 %v510, 16
        %v513 = vadd.s32 %v510, 24
        %v514 = vadd.s32 %v510, 32
        %v515 = vadd.s32 %v510, 40
        %v516 = vadd.s32 %v510, 48
        %v517 = vadd.s32 %v510, 56
        %v518 = vstv %s508
        %v519 = vadd.s32 %v518, %v510
        %v520 = vadd.s32 %v518, %v511
        %v521 = vadd.s32 %v518, %v512
        %v522 = vadd.s32 %v518, %v513
        %v523 = vadd.s32 %v518, %v514
        %v524 = vadd.s32 %v518, %v515
        %v525 = vadd.s32 %v518, %v516
        %v526 = vadd.s32 %v518, %v517
        %v527 = vstv %s507
        %vm528 = vcmp.lt.s32.totalorder %v519, %v527
        %vm529 = vcmp.lt.s32.totalorder %v520, %v527
        %vm530 = vcmp.lt.s32.totalorder %v521, %v527
        %vm531 = vcmp.lt.s32.totalorder %v522, %v527
        %vm532 = vcmp.lt.s32.totalorder %v523, %v527
        %vm533 = vcmp.lt.s32.totalorder %v524, %v527
        %vm534 = vcmp.lt.s32.totalorder %v525, %v527
        %vm535 = vcmp.lt.s32.totalorder %v526, %v527
        %v536 = vsel %vm528, 1, 0
        %v537 = vsel %vm529, 1, 0
        %v538 = vsel %vm530, 1, 0
        %v539 = vsel %vm531, 1, 0
        %v540 = vsel %vm532, 1, 0
        %v541 = vsel %vm533, 1, 0
        %v542 = vsel %vm534, 1, 0
        %v543 = vsel %vm535, 1, 0
        %vm544 = vcmp.eq.s32.totalorder %v536, 1
        %vm545 = vcmp.eq.s32.totalorder %v537, 1
        %vm546 = vcmp.eq.s32.totalorder %v538, 1
        %vm547 = vcmp.eq.s32.totalorder %v539, 1
        %vm548 = vcmp.eq.s32.totalorder %v540, 1
        %vm549 = vcmp.eq.s32.totalorder %v541, 1
        %vm550 = vcmp.eq.s32.totalorder %v542, 1
        %vm551 = vcmp.eq.s32.totalorder %v543, 1
        %v552 = vsel %vm544, %v459, 0.0
        %v553 = vsel %vm544, %v488, 0.0
        %v554 = vsel %vm545, %v461, 0.0
        %v555 = vsel %vm545, %v490, 0.0
        %v556 = vsel %vm546, %v464, 0.0
        %v557 = vsel %vm546, %v493, 0.0
        %v558 = vsel %vm547, %v466, 0.0
        %v559 = vsel %vm547, %v495, 0.0
        %v560 = vsel %vm548, %v469, 0.0
        %v561 = vsel %vm548, %v498, 0.0
        %v562 = vsel %vm549, %v471, 0.0
        %v563 = vsel %vm549, %v500, 0.0
        %v564 = vsel %vm550, %v474, 0.0
        %v565 = vsel %vm550, %v503, 0.0
        %v566 = vsel %vm551, %v476, 0.0
        %v567 = vsel %vm551, %v505, 0.0
        %568 = vst [vmem:[%s296] sm:$0xff] %v552
        %569 = vst [vmem:[%s296 + $0x8] sm:$0xff] %v553
        %570 = vst [vmem:[%s296 + $0x10] sm:$0xff] %v554
        %571 = vst [vmem:[%s296 + $0x18] sm:$0xff] %v555
        %572 = vst [vmem:[%s296 + $0x20] sm:$0xff] %v556
        %573 = vst [vmem:[%s296 + $0x28] sm:$0xff] %v557
        %574 = vst [vmem:[%s296 + $0x30] sm:$0xff] %v558
        %575 = vst [vmem:[%s296 + $0x38] sm:$0xff] %v559
        %576 = vst [vmem:[%s296 + $0x40] sm:$0xff] %v560
        %577 = vst [vmem:[%s296 + $0x48] sm:$0xff] %v561
        %578 = vst [vmem:[%s296 + $0x50] sm:$0xff] %v562
        %579 = vst [vmem:[%s296 + $0x58] sm:$0xff] %v563
        %580 = vst [vmem:[%s296 + $0x60] sm:$0xff] %v564
        %581 = vst [vmem:[%s296 + $0x68] sm:$0xff] %v565
        %582 = vst [vmem:[%s296 + $0x70] sm:$0xff] %v566
        %583 = vst [vmem:[%s296 + $0x78] sm:$0xff] %v567
        %v584 = vmax.f32 %v552, %v553
        %585 = vmax.xlane.f32.xlu0 %v584
        %v586 = vpop.xlane.xlu0 %585
        %v587 = vmax.f32 %v554, %v555
        %588 = vmax.xlane.f32.xlu0 %v587
        %v589 = vpop.xlane.xlu0 %588
        %v590 = vmax.f32 %v556, %v557
        %591 = vmax.xlane.f32.xlu0 %v590
        %v592 = vpop.xlane.xlu0 %591
        %v593 = vmax.f32 %v558, %v559
        %594 = vmax.xlane.f32.xlu0 %v593
        %v595 = vpop.xlane.xlu0 %594
        %v596 = vmax.f32 %v560, %v561
        %597 = vmax.xlane.f32.xlu0 %v596
        %v598 = vpop.xlane.xlu0 %597
        %v599 = vmax.f32 %v562, %v563
        %600 = vmax.xlane.f32.xlu0 %v599
        %v601 = vpop.xlane.xlu0 %600
        %v602 = vmax.f32 %v564, %v565
        %603 = vmax.xlane.f32.xlu0 %v602
        %v604 = vpop.xlane.xlu0 %603
        %v605 = vmax.f32 %v566, %v567
        %606 = vmax.xlane.f32.xlu0 %v605
        %v607 = vpop.xlane.xlu0 %606
        %v608 = vsub.f32 %v552, %v586
        %v609 = vsub.f32 %v553, %v586
        %v610 = vsub.f32 %v554, %v589
        %v611 = vsub.f32 %v555, %v589
        %v612 = vsub.f32 %v556, %v592
        %v613 = vsub.f32 %v557, %v592
        %v614 = vsub.f32 %v558, %v595
        %v615 = vsub.f32 %v559, %v595
        %v616 = vsub.f32 %v560, %v598
        %v617 = vsub.f32 %v561, %v598
        %v618 = vsub.f32 %v562, %v601
        %v619 = vsub.f32 %v563, %v601
        %v620 = vsub.f32 %v564, %v604
        %v621 = vsub.f32 %v565, %v604
        %v622 = vsub.f32 %v566, %v607
        %v623 = vsub.f32 %v567, %v607
        %v624 = vmul.f32 %v608, 1.442695
        %v625 = vpow.pop %v624
        %v626 = vmul.f32 %v609, 1.442695
        %v627 = vpow.pop %v626
        %v628 = vmul.f32 %v610, 1.442695
        %v629 = vpow.pop %v628
        %v630 = vmul.f32 %v611, 1.442695
        %v631 = vpow.pop %v630
        %v632 = vmul.f32 %v612, 1.442695
        %v633 = vpow.pop %v632
        %v634 = vmul.f32 %v613, 1.442695
        %v635 = vpow.pop %v634
        %v636 = vmul.f32 %v614, 1.442695
        %v637 = vpow.pop %v636
        %v638 = vmul.f32 %v615, 1.442695
        %v639 = vpow.pop %v638
        %v640 = vmul.f32 %v616, 1.442695
        %v641 = vpow.pop %v640
        %v642 = vmul.f32 %v617, 1.442695
        %v643 = vpow.pop %v642
        %v644 = vmul.f32 %v618, 1.442695
        %v645 = vpow.pop %v644
        %v646 = vmul.f32 %v619, 1.442695
        %v647 = vpow.pop %v646
        %v648 = vmul.f32 %v620, 1.442695
        %v649 = vpow.pop %v648
        %v650 = vmul.f32 %v621, 1.442695
        %v651 = vpow.pop %v650
        %v652 = vmul.f32 %v622, 1.442695
        %v653 = vpow.pop %v652
        %v654 = vmul.f32 %v623, 1.442695
        %v655 = vpow.pop %v654
        %v656 = vadd.f32 %v625, %v627
        %657 = vadd.xlane.f32.xlu0 %v656
        %v658 = vpop.xlane.xlu0 %657
        %v659 = vadd.f32 %v629, %v631
        %660 = vadd.xlane.f32.xlu0 %v659
        %v661 = vpop.xlane.xlu0 %660
        %v662 = vadd.f32 %v633, %v635
        %663 = vadd.xlane.f32.xlu0 %v662
        %v664 = vpop.xlane.xlu0 %663
        %v665 = vadd.f32 %v637, %v639
        %666 = vadd.xlane.f32.xlu0 %v665
        %v667 = vpop.xlane.xlu0 %666
        %v668 = vadd.f32 %v641, %v643
        %669 = vadd.xlane.f32.xlu0 %v668
        %v670 = vpop.xlane.xlu0 %669
        %v671 = vadd.f32 %v645, %v647
        %672 = vadd.xlane.f32.xlu0 %v671
        %v673 = vpop.xlane.xlu0 %672
        %v674 = vadd.f32 %v649, %v651
        %675 = vadd.xlane.f32.xlu0 %v674
        %v676 = vpop.xlane.xlu0 %675
        %v677 = vadd.f32 %v653, %v655
        %678 = vadd.xlane.f32.xlu0 %v677
        %v679 = vpop.xlane.xlu0 %678
        %v680 = vlog2.pop %v658
        %v681 = vmul.f32 %v680, 0.6931472
        %v682 = vlog2.pop %v661
        %v683 = vmul.f32 %v682, 0.6931472
        %v684 = vlog2.pop %v664
        %v685 = vmul.f32 %v684, 0.6931472
        %v686 = vlog2.pop %v667
        %v687 = vmul.f32 %v686, 0.6931472
        %v688 = vlog2.pop %v670
        %v689 = vmul.f32 %v688, 0.6931472
        %v690 = vlog2.pop %v673
        %v691 = vmul.f32 %v690, 0.6931472
        %v692 = vlog2.pop %v676
        %v693 = vmul.f32 %v692, 0.6931472
        %v694 = vlog2.pop %v679
        %v695 = vmul.f32 %v694, 0.6931472
        %v696 = vsub.f32 %v608, %v681
        %v697 = vsub.f32 %v609, %v681
        %v698 = vsub.f32 %v610, %v683
        %v699 = vsub.f32 %v611, %v683
        %v700 = vsub.f32 %v612, %v685
        %v701 = vsub.f32 %v613, %v685
        %v702 = vsub.f32 %v614, %v687
        %v703 = vsub.f32 %v615, %v687
        %v704 = vsub.f32 %v616, %v689
        %v705 = vsub.f32 %v617, %v689
        %v706 = vsub.f32 %v618, %v691
        %v707 = vsub.f32 %v619, %v691
        %v708 = vsub.f32 %v620, %v693
        %v709 = vsub.f32 %v621, %v693
        %v710 = vsub.f32 %v622, %v695
        %v711 = vsub.f32 %v623, %v695
        %712 = vst [vmem:[%s303] sm:$0xff] %v696
        %713 = vst [vmem:[%s303 + $0x8] sm:$0xff] %v697
        %714 = vst [vmem:[%s303 + $0x10] sm:$0xff] %v698
        %715 = vst [vmem:[%s303 + $0x18] sm:$0xff] %v699
        %716 = vst [vmem:[%s303 + $0x20] sm:$0xff] %v700
        %717 = vst [vmem:[%s303 + $0x28] sm:$0xff] %v701
        %718 = vst [vmem:[%s303 + $0x30] sm:$0xff] %v702
        %719 = vst [vmem:[%s303 + $0x38] sm:$0xff] %v703
        %720 = vst [vmem:[%s303 + $0x40] sm:$0xff] %v704
        %721 = vst [vmem:[%s303 + $0x48] sm:$0xff] %v705
        %722 = vst [vmem:[%s303 + $0x50] sm:$0xff] %v706
        %723 = vst [vmem:[%s303 + $0x58] sm:$0xff] %v707
        %724 = vst [vmem:[%s303 + $0x60] sm:$0xff] %v708
        %725 = vst [vmem:[%s303 + $0x68] sm:$0xff] %v709
        %726 = vst [vmem:[%s303 + $0x70] sm:$0xff] %v710
        %727 = vst [vmem:[%s303 + $0x78] sm:$0xff] %v711
        %v728 = vrcp.pop %v658
        %v729 = vrcp.pop %v661
        %v730 = vrcp.pop %v664
        %v731 = vrcp.pop %v667
        %v732 = vrcp.pop %v670
        %v733 = vrcp.pop %v673
        %v734 = vrcp.pop %v676
        %v735 = vrcp.pop %v679
        %v736 = vmul.f32 %v625, %v728
        %v737 = vmul.f32 %v627, %v728
        %v738 = vmul.f32 %v629, %v729
        %v739 = vmul.f32 %v631, %v729
        %v740 = vmul.f32 %v633, %v730
        %v741 = vmul.f32 %v635, %v730
        %v742 = vmul.f32 %v637, %v731
        %v743 = vmul.f32 %v639, %v731
        %v744 = vmul.f32 %v641, %v732
        %v745 = vmul.f32 %v643, %v732
        %v746 = vmul.f32 %v645, %v733
        %v747 = vmul.f32 %v647, %v733
        %v748 = vmul.f32 %v649, %v734
        %v749 = vmul.f32 %v651, %v734
        %v750 = vmul.f32 %v653, %v735
        %v751 = vmul.f32 %v655, %v735
        %752 = vst [vmem:[%s310] sm:$0xff] %v736
        %753 = vst [vmem:[%s310 + $0x8] sm:$0xff] %v737
        %754 = vst [vmem:[%s310 + $0x10] sm:$0xff] %v738
        %755 = vst [vmem:[%s310 + $0x18] sm:$0xff] %v739
        %756 = vst [vmem:[%s310 + $0x20] sm:$0xff] %v740
        %757 = vst [vmem:[%s310 + $0x28] sm:$0xff] %v741
        %758 = vst [vmem:[%s310 + $0x30] sm:$0xff] %v742
        %759 = vst [vmem:[%s310 + $0x38] sm:$0xff] %v743
        %760 = vst [vmem:[%s310 + $0x40] sm:$0xff] %v744
        %761 = vst [vmem:[%s310 + $0x48] sm:$0xff] %v745
        %762 = vst [vmem:[%s310 + $0x50] sm:$0xff] %v746
        %763 = vst [vmem:[%s310 + $0x58] sm:$0xff] %v747
        %764 = vst [vmem:[%s310 + $0x60] sm:$0xff] %v748
        %765 = vst [vmem:[%s310 + $0x68] sm:$0xff] %v749
        %766 = vst [vmem:[%s310 + $0x70] sm:$0xff] %v750
        %767 = vst [vmem:[%s310 + $0x78] sm:$0xff] %v751
        %s768 = sand.u32 %s128, 1
        %s769 = scalar_lea.sflag [#allocation6], %s768
        %s770 = sand.u32 %s128, 1
        %s771 = smul.addr %s770, 128
        %s772 = scalar_lea.vmem [#allocation9], %s771
        %s773 = sand.u32 %s36, 1
        %s774 = scalar_lea.sflag [#allocation11], %s773
        %s775 = sand.u32 %s156, 1
        %s776 = smul.addr %s775, 128
        %s777 = scalar_lea.vmem [#allocation10], %s776
        %s778 = sand.u32 %s36, 1
        %s779 = scalar_lea.sflag [#allocation11], %s778
        %s780 = sand.u32 %s184, 1
        %s781 = smul.addr %s780, 128
        %s782 = scalar_lea.vmem [#allocation12], %s781
        // Predicated region
        $region41: #{tpu_custom_call.1} parent=31 // pred_check
          %p783 = pneg %p138
        $region42: #{tpu_custom_call.1} parent=31 // pred_check_branch
          %785 = sbr.rel (%p783) target = $region44
        $region43: #{tpu_custom_call.1} parent=31 // pred_region
          %s786 = smul.u32 8, %s41
          %788 = vsyncadd %s769, 0
          %s789 = smul.addr %s786, 2
          %s790 = smul.addr %s40, 32
          %s791 = sadd.s32 %s789, %s790
          %s792 = smul.addr %s791, 8
          %s793 = scalar_lea.hbm %s4, %s792
          %s794 = sshll.u32 %s772, 4
          %s795 = int_to_ptr.vmem [resolvable:$true] %s794
          %s796 = sshll.u32 %s793, 4
          %s797 = int_to_ptr.hbm [resolvable:$true] %s796
          %802 = dma.vmem_to_hbm [thread:$0]  %s795, 2048, %s797, %s769, 256, 256, 16
        $region44: #{tpu_custom_call.1} parent=31 // pred_fallthru
          _
        // Predicated region
        $region45: #{tpu_custom_call.1} parent=31 // pred_check
          %p803 = pneg %p166
        $region46: #{tpu_custom_call.1} parent=31 // pred_check_branch
          %805 = sbr.rel (%p803) target = $region48
        $region47: #{tpu_custom_call.1} parent=31 // pred_region
          %s806 = smul.u32 8, %s41
          %808 = vsyncadd %s774, 0
          %s809 = smul.addr %s806, 2
          %s810 = smul.addr %s40, 32
          %s811 = sadd.s32 %s809, %s810
          %s812 = smul.addr %s811, 8
          %s813 = scalar_lea.hbm %s5, %s812
          %s814 = sshll.u32 %s777, 4
          %s815 = int_to_ptr.vmem [resolvable:$true] %s814
          %s816 = sshll.u32 %s813, 4
          %s817 = int_to_ptr.hbm [resolvable:$true] %s816
          %822 = dma.vmem_to_hbm [thread:$0]  %s815, 2048, %s817, %s774, 256, 256, 16
        $region48: #{tpu_custom_call.1} parent=31 // pred_fallthru
          _
        // Predicated region
        $region49: #{tpu_custom_call.1} parent=31 // pred_check
          %p823 = pneg %p194
        $region50: #{tpu_custom_call.1} parent=31 // pred_check_branch
          %825 = sbr.rel (%p823) target = $region52
        $region51: #{tpu_custom_call.1} parent=31 // pred_region
          %s826 = smul.u32 8, %s41
          %828 = vsyncadd %s779, 0
          %s829 = smul.addr %s826, 2
          %s830 = smul.addr %s40, 32
          %s831 = sadd.s32 %s829, %s830
          %s832 = smul.addr %s831, 8
          %s833 = scalar_lea.hbm %s6, %s832
          %s834 = sshll.u32 %s782, 4
          %s835 = int_to_ptr.vmem [resolvable:$true] %s834
          %s836 = sshll.u32 %s833, 4
          %s837 = int_to_ptr.hbm [resolvable:$true] %s836
          %842 = dma.vmem_to_hbm [thread:$0]  %s835, 2048, %s837, %s779, 256, 256, 16
        $region52: #{tpu_custom_call.1} parent=31 // pred_fallthru
          _
      $region32: #{tpu_custom_call.1} parent=5 // pred_fallthru
        _
      %p843 = scmp.le.s32.totalorder 2, %s31
      // Predicated region
      $region53: #{tpu_custom_call.1} parent=5 // pred_check
        %p844 = pneg %p843
      $region54: #{tpu_custom_call.1} parent=5 // pred_check_branch
        %846 = sbr.rel (%p844) target = $region56
      $region55: #{tpu_custom_call.1} parent=5 // pred_region
        %s847 = ssub.s32 %s31, 2
        // Predicated region
        $region57: #{tpu_custom_call.1} parent=55 // pred_check
          %p848 = pneg %p144
        $region58: #{tpu_custom_call.1} parent=55 // pred_check_branch
          %850 = sbr.rel (%p848) target = $region60
        $region59: #{tpu_custom_call.1} parent=55 // pred_region
          %s851 = sand.u32 %s129, 1
          %s852 = scalar_lea.sflag [#allocation6], %s851
          %s853 = sand.u32 %s129, 1
          %s854 = smul.addr %s853, 128
          %s855 = scalar_lea.vmem [#allocation9], %s854
          %857 = dma.done %s852, 2048
        $region60: #{tpu_custom_call.1} parent=55 // pred_fallthru
          _
        // Predicated region
        $region61: #{tpu_custom_call.1} parent=55 // pred_check
          %p858 = pneg %p172
        $region62: #{tpu_custom_call.1} parent=55 // pred_check_branch
          %860 = sbr.rel (%p858) target = $region64
        $region63: #{tpu_custom_call.1} parent=55 // pred_region
          %s861 = sand.u32 %s37, 1
          %s862 = scalar_lea.sflag [#allocation11], %s861
          %s863 = sand.u32 %s157, 1
          %s864 = smul.addr %s863, 128
          %s865 = scalar_lea.vmem [#allocation10], %s864
          %867 = dma.done %s862, 2048
        $region64: #{tpu_custom_call.1} parent=55 // pred_fallthru
          _
        // Predicated region
        $region65: #{tpu_custom_call.1} parent=55 // pred_check
          %p868 = pneg %p200
        $region66: #{tpu_custom_call.1} parent=55 // pred_check_branch
          %870 = sbr.rel (%p868) target = $region68
        $region67: #{tpu_custom_call.1} parent=55 // pred_region
          %s871 = sand.u32 %s37, 1
          %s872 = scalar_lea.sflag [#allocation11], %s871
          %s873 = sand.u32 %s185, 1
          %s874 = smul.addr %s873, 128
          %s875 = scalar_lea.vmem [#allocation12], %s874
          %877 = dma.done %s872, 2048
        $region68: #{tpu_custom_call.1} parent=55 // pred_fallthru
          _
      $region56: #{tpu_custom_call.1} parent=5 // pred_fallthru
        _
    $region6: #{tpu_custom_call.1} parent=1 // loop_footer
      %s35 = sadd.s32 1, %s31
    $region7: #{tpu_custom_call.1} parent=1 // loop_footer_branch
      %30 = sbr.rel target = $region3
    $region8: #{tpu_custom_call.1} parent=1 // loop_exit
      _
    %878 = vsyncpa [#allocation5], 1
    %s879 = scalar_lea.sflag [#allocation5], 1
    %880 = vsyncpa %s879, 1
    %881 = vsyncpa [#allocation8], 1
    %882 = vsyncpa [#allocation6], 1
    %s883 = scalar_lea.sflag [#allocation6], 1
    %884 = vsyncpa %s883, 1
    %885 = vsyncpa [#allocation11], 1
    %s886 = scalar_lea.sflag [#allocation11], 1
    %887 = vsyncpa %s886, 1

</llo_original>
